<compile_context>
chip_gen: v6e
topology: v6e:2x2x1
jax: 0.10.0
libtpu: 0.0.40
codegen_flags: <defaults>
</compile_context>

<pallas_src>
import functools
import math

import jax
import jax.numpy as jnp
from jax.experimental import pallas as pl
from jax.experimental.pallas import tpu as pltpu


def _sublane_pack(itemsize):
    # Rows packed per 32-bit sublane word: f32 -> 8, bf16 -> 16, int8/fp8 -> 32.
    return max(8, 32 // max(1, int(itemsize)))


def _padded_rows(c, itemsize):
    pack = _sublane_pack(itemsize)
    return ((c + pack - 1) // pack) * pack


def _chunk_plan(tile_n, chunk_n):
    """Static (lo, size) lane chunks covering [0, tile_n)."""
    chunks = []
    lo = 0
    while lo < tile_n:
        size = min(chunk_n, tile_n - lo)
        chunks.append((lo, size))
        lo += size
    return tuple(chunks)


def _wce_kernel(x_ref, y_ref, w_ref, loss_ref, acc_ref, *, chunks, tail_valid):
    """Grid = (B // bb, n_tiles); each step handles a (bb, C, tile_n) slab.

    x_ref, y_ref : (bb, C, tile_n) tiles in native dtype (cast to f32 in-register)
    w_ref        : (C, 1) prescaled weights = class_weights / (sum(w) * B * spatial)
    loss_ref     : (8, 128) lane-dense per-batch-block partial loss (scalar broadcast)
    acc_ref      : (C, 1) VMEM scratch, per-class running BCE sums
    """
    j = pl.program_id(1)
    n_j = pl.num_programs(1)
    C = acc_ref.shape[0]

    @pl.when(j == 0)
    def _():
        acc_ref[...] = jnp.zeros_like(acc_ref)

    def chunk_sum(lo, size, valid):
        # (bb, C, size) chunk -> (C, 1) per-class partial sum.
        x = x_ref[:, :, lo:lo + size].astype(jnp.float32)
        y = y_ref[:, :, lo:lo + size].astype(jnp.float32)
        # binary_cross_entropy with torch's log clamp at -100.
        log_x = jnp.maximum(jnp.log(x), -100.0)
        log_1mx = jnp.maximum(jnp.log1p(-x), -100.0)
        bce = -(y * log_x + (1.0 - y) * log_1mx)
        if valid is not None:
            # Static tail mask (select, not multiply: NaN/Inf from log of stale
            # VMEM lanes must not propagate).
            col = jax.lax.broadcasted_iota(jnp.int32, bce.shape, 2)
            bce = jnp.where(col < valid, bce, 0.0)
        per_class = jnp.sum(bce, axis=2, keepdims=True)   # (bb, C, 1) lane reduce (XLU)
        return jnp.sum(per_class, axis=0)                  # (C, 1)

    def full_tile():
        s = None
        for (lo, size) in chunks:
            part = chunk_sum(lo, size, None)
            s = part if s is None else s + part
        return s

    def tail_tile():
        s = jnp.zeros((C, 1), jnp.float32)
        for (lo, size) in chunks:
            if lo >= tail_valid:
                break                                     # fully out of range: skip
            if lo + size <= tail_valid:
                s = s + chunk_sum(lo, size, None)         # fully valid: no mask
            else:
                s = s + chunk_sum(lo, size, tail_valid - lo)
        return s

    if tail_valid is None:
        acc_ref[...] += full_tile()
    else:
        # Only the final spatial tile is ragged: interior tiles stay mask-free.
        @pl.when(j != n_j - 1)
        def _():
            acc_ref[...] += full_tile()

        @pl.when(j == n_j - 1)
        def _():
            acc_ref[...] += tail_tile()

    @pl.when(j == n_j - 1)
    def _():
        partial = jnp.sum(w_ref[...] * acc_ref[...], axis=0, keepdims=True)  # (1, 1)
        loss_ref[...] = jnp.broadcast_to(partial, loss_ref.shape)


def weighted_cross_entropy(output, y_true, class_weights, *,
                           max_tile_n=131072,
                           input_buffer_budget=24 * 1024 * 1024,
                           target_step_bytes=4 * 1024 * 1024,
                           max_chunk_n=8192,
                           vmem_limit_bytes=48 * 1024 * 1024):
    """output, y_true: [B, C, *spatial] float; class_weights: [C] float.

    Returns a scalar float32 loss identical to the PyTorch forward.
    """
    B, C = int(output.shape[0]), int(output.shape[1])
    spatial = int(math.prod(output.shape[2:]))
    total_n = B * spatial

    # Free reshapes only (no transpose / cast / pad — no extra HBM passes).
    x = output.reshape(B, C, spatial)
    y = y_true.reshape(B, C, spatial)

    isx = jnp.dtype(x.dtype).itemsize
    isy = jnp.dtype(y.dtype).itemsize
    # VMEM bytes per (batch row, lane column): Mosaic pads C up to the sublane
    # packing, so budget with the padded row count, not the raw C.
    col_bytes_padded = _padded_rows(C, isx) * isx + _padded_rows(C, isy) * isy
    col_bytes_real = C * (isx + isy)

    # --- spatial tile: as large as the double-buffered padded input budget allows.
    cap = max(128, ((input_buffer_budget // (2 * col_bytes_padded)) // 128) * 128)
    hw128 = ((spatial + 127) // 128) * 128
    tile_n = int(min(max_tile_n, cap))
    if tile_n >= hw128:
        # Whole spatial extent in one tile: use it exactly (full-dim block, so no
        # ragged handling is needed).
        tile_n, n_tiles, tail_valid = spatial, 1, None
    else:
        n_tiles = int(pl.cdiv(spatial, tile_n))
        rem = spatial - (n_tiles - 1) * tile_n
        tail_valid = None if rem == tile_n else rem

    # --- batch blocking: when one spatial tile is small, move several batch rows per
    # grid step so each step still transfers ~target_step_bytes of real input.
    bb = 1
    if n_tiles == 1 and B > 1:
        step_real = max(1, col_bytes_real * tile_n)
        bb_budget = max(1, input_buffer_budget // (2 * col_bytes_padded * max(tile_n, 1)))
        bb_want = max(1, -(-target_step_bytes // step_real))
        bb_cap = min(B, bb_budget, bb_want)
        for d in range(bb_cap, 0, -1):
            if B % d == 0:
                bb = d
                break
    n_bb = B // bb

    # --- lane-chunk plan: bound each f32 temporary to ~2 MiB so Mosaic never has to
    # materialize whole-tile intermediates; keeps dependency chains and vreg pressure low.
    temp_budget = 2 * 1024 * 1024
    cpad32 = _padded_rows(C, 4)
    chunk_n = max(128, ((temp_budget // (bb * cpad32 * 4)) // 128) * 128)
    chunk_n = min(chunk_n, max_chunk_n, max(tile_n, 1))
    chunks = _chunk_plan(tile_n, chunk_n)

    # Fold weight normalization and the per-class mean divisor into the weights.
    w = class_weights.reshape(C, 1).astype(jnp.float32)
    w_scaled = w / (jnp.sum(w) * jnp.float32(total_n))

    kernel = functools.partial(_wce_kernel, chunks=chunks, tail_valid=tail_valid)

    partials = pl.pallas_call(
        kernel,
        out_shape=jax.ShapeDtypeStruct((n_bb, 8, 128), jnp.float32),
        grid_spec=pltpu.PrefetchScalarGridSpec(
            num_scalar_prefetch=0,
            grid=(n_bb, n_tiles),
            in_specs=[
                pl.BlockSpec((bb, C, tile_n), lambda b, j: (b, 0, j)),  # output tile
                pl.BlockSpec((bb, C, tile_n), lambda b, j: (b, 0, j)),  # target tile
                pl.BlockSpec((C, 1), lambda b, j: (0, 0)),              # scaled weights
            ],
            out_specs=pl.BlockSpec((None, 8, 128), lambda b, j: (b, 0, 0)),
            scratch_shapes=[pltpu.VMEM((C, 1), jnp.float32)],
        ),
        compiler_params=pltpu.CompilerParams(
            dimension_semantics=("parallel", "arbitrary"),  # batch across cores, spatial reduction
            vmem_limit_bytes=vmem_limit_bytes,
        ),
    )(x, y, w_scaled)

    # Each batch-block row produced a partial loss (broadcast into an (8,128) slab).
    return jnp.sum(partials[:, 0, 0])


def _reference(output, y_true, class_weights):
    """Pure-JAX reference mirroring the PyTorch forward."""
    C = output.shape[1]
    w_sum = jnp.sum(class_weights)
    loss = jnp.float32(0.0)
    for c in range(C):
        x = output[:, c].astype(jnp.float32)
        y = y_true[:, c].astype(jnp.float32)
        log_x = jnp.maximum(jnp.log(x), -100.0)
        log_1mx = jnp.maximum(jnp.log1p(-x), -100.0)
        bce = jnp.mean(-(y * log_x + (1.0 - y) * log_1mx))
        loss = loss + (class_weights[c] / w_sum) * bce
    return loss


if __name__ == "__main__":
    key = jax.random.PRNGKey(0)
    k1, k2, k3 = jax.random.split(key, 3)

    B, C, H, W = 2, 4, 16, 16
    # "output" is probabilities in (0, 1); "y_true" is a one-hot map.
    output = jax.nn.sigmoid(jax.random.normal(k1, (B, C, H, W), dtype=jnp.float32))
    labels = jax.random.randint(k2, (B, H, W), 0, C)
    y_true = jax.nn.one_hot(labels, C, dtype=jnp.float32).transpose(0, 3, 1, 2)
    class_weights = jax.random.uniform(k3, (C,), dtype=jnp.float32, minval=0.5, maxval=2.0)

    loss = weighted_cross_entropy(output, y_true, class_weights)
    loss = jax.block_until_ready(loss)

    ref = _reference(output, y_true, class_weights)
    assert jnp.allclose(loss, ref, rtol=1e-5, atol=1e-5), (loss, ref)

    print("KERNEL_OK")
</pallas_src>

<mosaic_0001>
module attributes {stable_mosaic.version = 11 : i64} {
  func.func @_wce_kernel(%arg0: i32, %arg1: i32, %arg2: memref<2x4x256xf32, #tpu.memory_space<vmem>>, %arg3: memref<2x4x256xf32, #tpu.memory_space<vmem>>, %arg4: memref<4x1xf32, #tpu.memory_space<vmem>>, %arg5: memref<1x8x128xf32, #tpu.memory_space<vmem>>, %arg6: memref<4x1xf32, #tpu.memory_space<vmem>>) attributes {dimension_semantics = [#tpu.dimension_semantics<parallel>, #tpu.dimension_semantics<arbitrary>], iteration_bounds = array<i64: 1, 1>, scalar_prefetch = 0 : i64, scratch_operands = 1 : i64, tpu.core_type = #tpu.core_type<tc>, window_params = [{transform_indices = @transform_0, window_bounds = array<i64: 2, 4, 256>}, {transform_indices = @transform_1, window_bounds = array<i64: 2, 4, 256>}, {pipeline_mode = #tpu.pipeline_mode<synchronous>, transform_indices = @transform_2, window_bounds = array<i64: 4, 1>}, {transform_indices = @transform_3, window_bounds = array<i64: 1, 8, 128>}]} {
    %c0_i32 = arith.constant 0 : i32
    %0 = arith.cmpi eq, %arg1, %c0_i32 : i32
    %1 = arith.extui %0 : i1 to i32
    %c0_i32_0 = arith.constant 0 : i32
    %2 = arith.cmpi ne, %1, %c0_i32_0 : i32
    scf.if %2 {
      %cst_18 = arith.constant 0.000000e+00 : f32
      %29 = vector.broadcast %cst_18 : f32 to vector<4x1xf32>
      %c0_19 = arith.constant 0 : index
      %c0_20 = arith.constant 0 : index
      %30 = vector.load %arg6[%c0_19, %c0_20] : memref<4x1xf32, #tpu.memory_space<vmem>>, vector<4x1xf32>
      tpu.vector_store %arg6[%c0_19, %c0_20], %29 {strides = array<i32>} : memref<4x1xf32, #tpu.memory_space<vmem>>, vector<4x1xf32>,
    } else {
    }
    %c0 = arith.constant 0 : index
    %c0_1 = arith.constant 0 : index
    %3 = vector.load %arg6[%c0, %c0_1] : memref<4x1xf32, #tpu.memory_space<vmem>>, vector<4x1xf32>
    %c0_2 = arith.constant 0 : index
    %c0_3 = arith.constant 0 : index
    %c0_4 = arith.constant 0 : index
    %4 = vector.load %arg2[%c0_2, %c0_3, %c0_4] : memref<2x4x256xf32, #tpu.memory_space<vmem>>, vector<2x4x256xf32>
    %c0_5 = arith.constant 0 : index
    %c0_6 = arith.constant 0 : index
    %c0_7 = arith.constant 0 : index
    %5 = vector.load %arg3[%c0_5, %c0_6, %c0_7] : memref<2x4x256xf32, #tpu.memory_space<vmem>>, vector<2x4x256xf32>
    %6 = math.log %4 : vector<2x4x256xf32>
    %cst = arith.constant -1.000000e+02 : f32
    %7 = vector.broadcast %cst : f32 to vector<2x4x256xf32>
    %8 = arith.maximumf %6, %7 : vector<2x4x256xf32>
    %cst_8 = arith.constant 0.000000e+00 : f32
    %9 = vector.broadcast %cst_8 : f32 to vector<2x4x256xf32>
    %10 = arith.subf %9, %4 : vector<2x4x256xf32>
    %11 = math.log1p %10 : vector<2x4x256xf32>
    %cst_9 = arith.constant -1.000000e+02 : f32
    %12 = vector.broadcast %cst_9 : f32 to vector<2x4x256xf32>
    %13 = arith.maximumf %11, %12 : vector<2x4x256xf32>
    %14 = arith.mulf %5, %8 : vector<2x4x256xf32>
    %cst_10 = arith.constant 1.000000e+00 : f32
    %15 = vector.broadcast %cst_10 : f32 to vector<2x4x256xf32>
    %16 = arith.subf %15, %5 : vector<2x4x256xf32>
    %17 = arith.mulf %16, %13 : vector<2x4x256xf32>
    %18 = arith.addf %14, %17 : vector<2x4x256xf32>
    %cst_11 = arith.constant 0.000000e+00 : f32
    %19 = vector.broadcast %cst_11 : f32 to vector<2x4x256xf32>
    %20 = arith.subf %19, %18 : vector<2x4x256xf32>
    %cst_12 = arith.constant dense<0.000000e+00> : vector<2x4xf32>
    %21 = vector.multi_reduction <add>, %20, %cst_12 [2] : vector<2x4x256xf32> to vector<2x4xf32>
    %22 = vector.shape_cast %21 : vector<2x4xf32> to vector<2x4x1xf32>
    %cst_13 = arith.constant dense<0.000000e+00> : vector<4x1xf32>
    %23 = vector.multi_reduction <add>, %22, %cst_13 [0] : vector<2x4x1xf32> to vector<4x1xf32>
    %24 = arith.addf %3, %23 : vector<4x1xf32>
    %c0_14 = arith.constant 0 : index
    %c0_15 = arith.constant 0 : index
    %25 = vector.load %arg6[%c0_14, %c0_15] : memref<4x1xf32, #tpu.memory_space<vmem>>, vector<4x1xf32>
    tpu.vector_store %arg6[%c0_14, %c0_15], %24 {strides = array<i32>} : memref<4x1xf32, #tpu.memory_space<vmem>>, vector<4x1xf32>,
    %c0_i32_16 = arith.constant 0 : i32
    %26 = arith.cmpi eq, %arg1, %c0_i32_16 : i32
    %27 = arith.extui %26 : i1 to i32
    %c0_i32_17 = arith.constant 0 : i32
    %28 = arith.cmpi ne, %27, %c0_i32_17 : i32
    scf.if %28 {
      %c0_18 = arith.constant 0 : index
      %c0_19 = arith.constant 0 : index
      %29 = vector.load %arg4[%c0_18, %c0_19] : memref<4x1xf32, #tpu.memory_space<vmem>>, vector<4x1xf32>
      %c0_20 = arith.constant 0 : index
      %c0_21 = arith.constant 0 : index
      %30 = vector.load %arg6[%c0_20, %c0_21] : memref<4x1xf32, #tpu.memory_space<vmem>>, vector<4x1xf32>
      %31 = arith.mulf %29, %30 : vector<4x1xf32>
      %cst_22 = arith.constant dense<0.000000e+00> : vector<1xf32>
      %32 = vector.multi_reduction <add>, %31, %cst_22 [0] : vector<4x1xf32> to vector<1xf32>
      %33 = vector.shape_cast %32 : vector<1xf32> to vector<1x1xf32>
      %34 = vector.shape_cast %33 : vector<1x1xf32> to vector<1x1xf32>
      %35 = vector.broadcast %34 : vector<1x1xf32> to vector<8x128xf32>
      %c0_23 = arith.constant 0 : index
      %c0_24 = arith.constant 0 : index
      %c0_25 = arith.constant 0 : index
      %36 = vector.load %arg5[%c0_23, %c0_24, %c0_25] : memref<1x8x128xf32, #tpu.memory_space<vmem>>, vector<1x8x128xf32>
      %37 = vector.shape_cast %36 : vector<1x8x128xf32> to vector<8x128xf32>
      %38 = vector.shape_cast %35 : vector<8x128xf32> to vector<1x8x128xf32>
      tpu.vector_store %arg5[%c0_23, %c0_24, %c0_25], %38 {strides = array<i32>} : memref<1x8x128xf32, #tpu.memory_space<vmem>>, vector<1x8x128xf32>,
    } else {
    }
    return
  }
  func.func @transform_0(%arg0: i32, %arg1: i32) -> (i32, i32, i32) {
    %c0_i32 = arith.constant 0 : i32
    %c0_i32_0 = arith.constant 0 : i32
    return %arg0, %c0_i32, %arg1 : i32, i32, i32
  }
  func.func @transform_1(%arg0: i32, %arg1: i32) -> (i32, i32, i32) {
    %c0_i32 = arith.constant 0 : i32
    %c0_i32_0 = arith.constant 0 : i32
    return %arg0, %c0_i32, %arg1 : i32, i32, i32
  }
  func.func @transform_2(%arg0: i32, %arg1: i32) -> (i32, i32) {
    %c0_i32 = arith.constant 0 : i32
    %c0_i32_0 = arith.constant 0 : i32
    %c0_i32_1 = arith.constant 0 : i32
    return %c0_i32, %c0_i32_0 : i32, i32
  }
  func.func @transform_3(%arg0: i32, %arg1: i32) -> (i32, i32, i32) {
    %c0_i32 = arith.constant 0 : i32
    %c0_i32_0 = arith.constant 0 : i32
    %c0_i32_1 = arith.constant 0 : i32
    return %arg0, %c0_i32, %c0_i32_0 : i32, i32, i32
  }
}

</mosaic_0001>

<llo_original>
// kernel: tpu_custom_call.1
$region0: #{tpu_custom_call.1}
  #allocation0 [shape = 'u32[]', space=smem, size = 0x4, offset = 0x4, fixed_abs, tag = 'smem constant byte address 0x4 - core index']
  #allocation1 [shape = 'u32[144,128]{1,0:T(1,128)}', space=vmem, size = 0x12000, scoped, tag = 'internal scratch']
  #allocation2 [shape = 'f32[4,1]{1,0:T(4,128)}', space=vmem, size = 0x800, scoped, tag = 'scratch operand']
  %s0 = inlined_call_operand.hbm [shape: f32[2,4,256], index: 0, kind: input, shape index: {}]
  %s1 = inlined_call_operand.hbm [shape: f32[2,4,256], index: 1, kind: input, shape index: {}]
  %s2 = inlined_call_operand.vmem [shape: f32[4,1], index: 2, kind: input, shape index: {}]
  %s3 = inlined_call_operand.hbm [shape: f32[1,8,128], index: 3, kind: output, shape index: {}]
  %s4 = sld [smem:[#allocation0]]
  $region38: #{tpu_custom_call.1} parent=0
    _
  %s6 = ssub.s32 1, %s4
  %s7 = scalar_select 0, %s6, %s4
  $region1: #{tpu_custom_call.1} parent=0
    #allocation3 [shape = 'u8[8192]{0}', space=vmem, size = 0x2000, scoped, tag = 'input window, operand 0, single buffered']
    #allocation4 [shape = 's32[1]{0}', space=sflag, size = 0x4, scoped, tag = 'scoped memory for tpu_custom_call.1']
    #allocation5 [shape = 's32[1]{0}', space=sflag, size = 0x4, scoped, tag = 'scoped memory for tpu_custom_call.1']
    #allocation6 [shape = 'u8[8192]{0}', space=vmem, size = 0x2000, scoped, tag = 'input window, operand 1, single buffered']
    #allocation7 [shape = 's32[1]{0}', space=sflag, size = 0x4, scoped, tag = 'scoped memory for tpu_custom_call.1']
    #allocation8 [shape = 'u8[4096]{0}', space=vmem, size = 0x1000, scoped, tag = 'output window, operand 0, single buffered']
    %8 = vsyncpa [#allocation4], 0
    %9 = vsyncpa [#allocation7], 0
    %10 = vsyncpa [#allocation5], 0
    // Predicated region
    $region2: #{tpu_custom_call.1} parent=1 // pred_check
      _
    $region3: #{tpu_custom_call.1} parent=1 // pred_check_branch
      %12 = sbr.rel (0) target = $region5
    $region4: #{tpu_custom_call.1} parent=1 // pred_region
      %s14 = ssub.s32 256, 256
      %15 = vsyncadd [#allocation4], %s14
      %s16 = sshll.u32 [#allocation3], 4
      %s17 = int_to_ptr.vmem [resolvable:$true] %s16
      %22 = dma.hbm_to_vmem [thread:$0]  %s0, 256, %s17, [#allocation4], 128, 128, 8
    $region5: #{tpu_custom_call.1} parent=1 // pred_fallthru
      _
    // Predicated region
    $region6: #{tpu_custom_call.1} parent=1 // pred_check
      _
    $region7: #{tpu_custom_call.1} parent=1 // pred_check_branch
      %24 = sbr.rel (0) target = $region9
    $region8: #{tpu_custom_call.1} parent=1 // pred_region
      %s26 = ssub.s32 256, 256
      %27 = vsyncadd [#allocation7], %s26
      %s28 = sshll.u32 [#allocation6], 4
      %s29 = int_to_ptr.vmem [resolvable:$true] %s28
      %34 = dma.hbm_to_vmem [thread:$0]  %s1, 256, %s29, [#allocation7], 128, 128, 8
    $region9: #{tpu_custom_call.1} parent=1 // pred_fallthru
      _
    // Predicated region
    $region10: #{tpu_custom_call.1} parent=1 // pred_check
      _
    $region11: #{tpu_custom_call.1} parent=1 // pred_check_branch
      %36 = sbr.rel (0) target = $region13
    $region12: #{tpu_custom_call.1} parent=1 // pred_region
      _
    $region13: #{tpu_custom_call.1} parent=1 // pred_fallthru
      _
    // Predicated region
    $region14: #{tpu_custom_call.1} parent=1 // pred_check
      _
    $region15: #{tpu_custom_call.1} parent=1 // pred_check_branch
      %38 = sbr.rel (0) target = $region17
    $region16: #{tpu_custom_call.1} parent=1 // pred_region
      %39 = dma.done [#allocation4], 256
    $region17: #{tpu_custom_call.1} parent=1 // pred_fallthru
      _
    // Predicated region
    $region18: #{tpu_custom_call.1} parent=1 // pred_check
      _
    $region19: #{tpu_custom_call.1} parent=1 // pred_check_branch
      %41 = sbr.rel (0) target = $region21
    $region20: #{tpu_custom_call.1} parent=1 // pred_region
      %42 = dma.done [#allocation7], 256
    $region21: #{tpu_custom_call.1} parent=1 // pred_fallthru
      _
    %p43 = scmp.eq.s32.totalorder 0, 0
    // Predicated region
    $region22: #{tpu_custom_call.1} parent=1 // pred_check
      %p44 = pneg %p43
    $region23: #{tpu_custom_call.1} parent=1 // pred_check_branch
      %46 = sbr.rel (%p44) target = $region25
    $region24: #{tpu_custom_call.1} parent=1 // pred_region
      %vm47 = vcmask 3072
      %48 = vst.msk [vmem:[#allocation2] sm:$0xf] %vm47, 0.0
    $region25: #{tpu_custom_call.1} parent=1 // pred_fallthru
      _
    %v49 = vld [vmem:[#allocation2] sm:$0xf]
    %v50 = vld [vmem:[#allocation3] sm:$0xff]
    %v51 = vld [vmem:[#allocation3 + $0x8] sm:$0xff]
    %v52 = vld [vmem:[#allocation6] sm:$0xff]
    %v53 = vld [vmem:[#allocation6 + $0x8] sm:$0xff]
    %v54 = vlog2.pop %v50
    %v55 = vmul.f32 %v54, 0.6931472
    %v56 = vlog2.pop %v51
    %v57 = vmul.f32 %v56, 0.6931472
    %v58 = vmax.f32 %v55, -100.0
    %v59 = vmax.f32 %v57, -100.0
    %v60 = vsub.f32 0.0, %v50
    %v61 = vsub.f32 0.0, %v51
    %v62 = vadd.f32 %v60, 1.0
    %v63 = vlog2.pop %v62
    %v64 = vmul.f32 %v63, 0.6931472
    %v65 = vmul.f32 -0.5, %v60
    %v66 = vadd.f32 %v65, 1.0
    %v67 = vmul.f32 %v66, %v60
    %v68 = vand.u32 2147483647, %v60
    %vm69 = vcmp.lt.f32.partialorder %v68, 0.0004427343
    %v70 = vsel %vm69, %v67, %v64
    %v71 = vadd.f32 %v61, 1.0
    %v72 = vlog2.pop %v71
    %v73 = vmul.f32 %v72, 0.6931472
    %v74 = vmul.f32 -0.5, %v61
    %v75 = vadd.f32 %v74, 1.0
    %v76 = vmul.f32 %v75, %v61
    %v77 = vand.u32 2147483647, %v61
    %vm78 = vcmp.lt.f32.partialorder %v77, 0.0004427343
    %v79 = vsel %vm78, %v76, %v73
    %v80 = vmax.f32 %v70, -100.0
    %v81 = vmax.f32 %v79, -100.0
    %v82 = vmul.f32 %v52, %v58
    %v83 = vmul.f32 %v53, %v59
    %v84 = vsub.f32 1.0, %v52
    %v85 = vsub.f32 1.0, %v53
    %v86 = vmul.f32 %v84, %v80
    %v87 = vmul.f32 %v85, %v81
    %v88 = vadd.f32 %v82, %v86
    %v89 = vadd.f32 %v83, %v87
    %v90 = vsub.f32 0.0, %v88
    %v91 = vsub.f32 0.0, %v89
    %v94 = vcombine.high %v90, %v90
    %v95 = vcombine.high %v91, %v91
    %vm98 = vcmask 1043456
    %v99 = vsel %vm98, %v90, 0.0
    %v100 = vsel %vm98, %v94, 0.0
    %v101 = vadd.f32 %v99, %v100
    %102 = vadd.xlane.f32.xlu0 %v101
    %v103 = vpop.xlane.xlu0 %102
    %v104 = vsel %vm98, %v91, 0.0
    %v105 = vsel %vm98, %v95, 0.0
    %v106 = vadd.f32 %v104, %v105
    %107 = vadd.xlane.f32.xlu0 %v106
    %v108 = vpop.xlane.xlu0 %107
    %v109 = vsel %vm98, %v103, 0.0
    %v110 = vsel %vm98, %v108, 0.0
    %v111 = vadd.f32 %v109, %v110
    %v112 = vadd.f32 %v49, %v111
    %vm113 = vcmask 3072
    %114 = vst.msk [vmem:[#allocation2] sm:$0xf] %vm113, %v112
    // Predicated region
    $region26: #{tpu_custom_call.1} parent=1 // pred_check
      %p115 = pneg %p43
    $region27: #{tpu_custom_call.1} parent=1 // pred_check_branch
      %117 = sbr.rel (%p115) target = $region29
    $region28: #{tpu_custom_call.1} parent=1 // pred_region
      %v118 = vld [vmem:[%s2] sm:$0xf]
      %v119 = vld [vmem:[#allocation2] sm:$0xf]
      %v120 = vmul.f32 %v118, %v119
      %v121 = vsel %vm113, %v120, 0.0
      %v122 = vrot.slane %v121, 4
      %v123 = vadd.f32 %v121, %v122
      %v124 = vrot.slane %v123, 2
      %v125 = vadd.f32 %v123, %v124
      %v126 = vrot.slane %v125, 1
      %v127 = vadd.f32 %v125, %v126
      %129 = vset.pattern.permute.xlu0 0
      %130 = vperm.xlu0 %129, %v127
      %v131 = vpop.permute.xlu0 %130
      %133 = vst [vmem:[#allocation8] sm:$0xff] %v131
    $region29: #{tpu_custom_call.1} parent=1 // pred_fallthru
      _
    // Predicated region
    $region30: #{tpu_custom_call.1} parent=1 // pred_check
      _
    $region31: #{tpu_custom_call.1} parent=1 // pred_check_branch
      %135 = sbr.rel (0) target = $region33
    $region32: #{tpu_custom_call.1} parent=1 // pred_region
      %s137 = ssub.s32 128, 128
      %138 = vsyncadd [#allocation5], %s137
      %s140 = sshll.u32 [#allocation8], 4
      %s141 = int_to_ptr.vmem [resolvable:$true] %s140
      %143 = dma.vmem_to_hbm [thread:$0]  %s141, 128, %s3, [#allocation5]
    $region33: #{tpu_custom_call.1} parent=1 // pred_fallthru
      _
    // Predicated region
    $region34: #{tpu_custom_call.1} parent=1 // pred_check
      _
    $region35: #{tpu_custom_call.1} parent=1 // pred_check_branch
      %145 = sbr.rel (0) target = $region37
    $region36: #{tpu_custom_call.1} parent=1 // pred_region
      %146 = dma.done [#allocation5], 128
    $region37: #{tpu_custom_call.1} parent=1 // pred_fallthru
      _
    %147 = vsyncpa [#allocation4], 1
    %148 = vsyncpa [#allocation7], 1
    %149 = vsyncpa [#allocation5], 1

</llo_original>
